<compile_context>
chip_gen: v7x
topology: tpu7x:2x2x1
jax: 0.10.0
libtpu: 0.0.40
codegen_flags: <defaults>
</compile_context>

<pallas_src>
import jax
import jax.numpy as jnp
from jax.experimental import pallas as pl
from jax.experimental.pallas import tpu as pltpu


def highway_kernel(x_ref, wf_ref, bf_ref, o_ref):
    x = x_ref[...]                                            # (tm, D) f32
    D = x.shape[1]
    # Standard (M,K)x(K,N) matmul on the MXU: weight already laid out (D, 2D).
    h = jnp.dot(x, wf_ref[...], preferred_element_type=jnp.float32) + bf_ref[...]
    t = jax.nn.sigmoid(h[:, :D])                              # gate = sigmoid(fc1(x))
    relu2 = jnp.maximum(h[:, D:], 0.0)                        # relu(fc2(x))
    # t * relu2 + (1 - t) * x  ==  x + t * (relu2 - x)
    o_ref[...] = (x + t * (relu2 - x)).astype(o_ref.dtype)


def _vmem_limit_bytes() -> int:
    """Generation-aware VMEM request: ~48 MiB on v7x (64 MiB phys), 64 MiB on v5e/v6e."""
    cap = 128 << 20
    try:
        cap = int(pltpu.get_tpu_info().vmem_capacity_bytes)
    except Exception:
        pass
    return int(min(64 << 20, max(32 << 20, cap - (16 << 20))))


def highway(x, w1, b1, w2, b2, *, max_tm=1024):
    """x: (N, D) float32. w1/w2: PyTorch-style (out, in) = (D, D). b1/b2: (D,)."""
    N, D = x.shape

    # Fuse the two Linear layers and pre-transpose ONCE to (D, 2D) "(K, N)" layout so the
    # kernel does a plain MXU matmul with no per-step RHS relayout.
    w_fused = jnp.concatenate([w1.T, w2.T], axis=1)           # (D, 2D)
    b_fused = jnp.concatenate([b1, b2], axis=0).reshape(1, 2 * D)

    vmem_limit = _vmem_limit_bytes()

    # Derive the row tile from the VMEM budget:
    #   resident weight/bias + double-buffered x & out tiles + ~one (tm, 2D) intermediate.
    # bytes ~= 8*D^2 + tm*D*4*(2 + 2 + 2); keep under ~60% of the requested VMEM.
    budget = int(vmem_limit * 0.6)
    weight_bytes = (w_fused.size + b_fused.size) * 4
    per_row_bytes = D * 4 * 6
    tm_cap = max(8, (budget - weight_bytes) // per_row_bytes)
    tm_target = max(8, min(int(max_tm), (int(tm_cap) // 8) * 8))
    # TODO(synk): for very large D where the (D, 2D) f32 weight no longer fits resident in
    # VMEM, fall back to tiling the contraction dim with an f32 accumulator (and/or bf16
    # weights); not needed at these sizes.

    # Row tile: multiple of 8, clamped to the 8-padded batch; keep >=2 grid steps when
    # possible so both v7x TensorCores get work from the "parallel" axis.
    n8 = pl.cdiv(N, 8) * 8
    tm_eff = min(tm_target, n8)
    if tm_eff == n8 and n8 >= 16:
        tm_eff = pl.cdiv(pl.cdiv(n8, 2), 8) * 8

    n_pad = pl.cdiv(N, tm_eff) * tm_eff
    x_p = jnp.pad(x, ((0, n_pad - N), (0, 0))) if n_pad != N else x

    grid = (n_pad // tm_eff,)
    out = pl.pallas_call(
        highway_kernel,
        out_shape=jax.ShapeDtypeStruct((n_pad, D), x.dtype),
        grid_spec=pltpu.PrefetchScalarGridSpec(
            num_scalar_prefetch=0,
            grid=grid,
            in_specs=[
                pl.BlockSpec((tm_eff, D), lambda i: (i, 0)),              # x row tile
                pl.BlockSpec((D, 2 * D), lambda i: (0, 0),
                             pipeline_mode=pl.Buffered(1)),               # fused W (resident)
                pl.BlockSpec((1, 2 * D), lambda i: (0, 0),
                             pipeline_mode=pl.Buffered(1)),               # fused bias
            ],
            out_specs=pl.BlockSpec((tm_eff, D), lambda i: (i, 0)),
        ),
        compiler_params=pltpu.CompilerParams(
            dimension_semantics=("parallel",),
            vmem_limit_bytes=vmem_limit,
        ),
    )(x_p, w_fused, b_fused)
    return out[:N] if n_pad != N else out


def highway_ref(x, w1, b1, w2, b2):
    """Pure-JAX reference matching the PyTorch forward."""
    t = jax.nn.sigmoid(x @ w1.T + b1)
    return t * jnp.maximum(x @ w2.T + b2, 0.0) + (1.0 - t) * x


if __name__ == "__main__":
    key = jax.random.PRNGKey(0)
    N, D = 64, 128   # batch rows, input_size (lane-aligned so the D-split is a vreg boundary)

    kx, kw1, kb1, kw2, kb2 = jax.random.split(key, 5)
    x = jax.random.normal(kx, (N, D), dtype=jnp.float32)
    # Deterministic synthetic parameters (PyTorch Linear shapes: (out, in) and (out,))
    bound = 1.0 / (D ** 0.5)
    w1 = jax.random.uniform(kw1, (D, D), minval=-bound, maxval=bound, dtype=jnp.float32)
    b1 = jax.random.uniform(kb1, (D,), minval=-bound, maxval=bound, dtype=jnp.float32)
    w2 = jax.random.uniform(kw2, (D, D), minval=-bound, maxval=bound, dtype=jnp.float32)
    b2 = jax.random.uniform(kb2, (D,), minval=-bound, maxval=bound, dtype=jnp.float32)

    out = highway(x, w1, b1, w2, b2)
    out = jax.block_until_ready(out)

    ref = highway_ref(x, w1, b1, w2, b2)
    assert jnp.allclose(out, ref, atol=1e-5, rtol=1e-5), "mismatch vs reference"

    print("KERNEL_OK")
</pallas_src>

<mosaic_0001>
module attributes {stable_mosaic.version = 11 : i64} {
  func.func @highway_kernel(%arg0: i32, %arg1: memref<32x128xf32, #tpu.memory_space<vmem>>, %arg2: memref<128x256xf32, #tpu.memory_space<vmem>>, %arg3: memref<1x256xf32, #tpu.memory_space<vmem>>, %arg4: memref<32x128xf32, #tpu.memory_space<vmem>>) attributes {dimension_semantics = [#tpu.dimension_semantics<parallel>], iteration_bounds = array<i64: 2>, scalar_prefetch = 0 : i64, scratch_operands = 0 : i64, tpu.core_type = #tpu.core_type<tc>, window_params = [{transform_indices = @transform_0, window_bounds = array<i64: 32, 128>}, {pipeline_mode = #tpu.pipeline_mode<synchronous>, transform_indices = @transform_1, window_bounds = array<i64: 128, 256>}, {pipeline_mode = #tpu.pipeline_mode<synchronous>, transform_indices = @transform_2, window_bounds = array<i64: 1, 256>}, {transform_indices = @transform_3, window_bounds = array<i64: 32, 128>}]} {
    %c0 = arith.constant 0 : index
    %c0_0 = arith.constant 0 : index
    %0 = vector.load %arg1[%c0, %c0_0] : memref<32x128xf32, #tpu.memory_space<vmem>>, vector<32x128xf32>
    %c0_1 = arith.constant 0 : index
    %c0_2 = arith.constant 0 : index
    %1 = vector.load %arg2[%c0_1, %c0_2] : memref<128x256xf32, #tpu.memory_space<vmem>>, vector<128x256xf32>
    %cst = arith.constant dense<0.000000e+00> : vector<32x256xf32>
    %2 = tpu.matmul %0, %1, %cst {dimension_numbers = #tpu.dot_dimension_numbers<[1], [0], [0], [1], [0, 0, 1, 1], [], []>} : vector<32x128xf32>, vector<128x256xf32>, vector<32x256xf32> -> vector<32x256xf32>
    %c0_3 = arith.constant 0 : index
    %c0_4 = arith.constant 0 : index
    %3 = vector.load %arg3[%c0_3, %c0_4] : memref<1x256xf32, #tpu.memory_space<vmem>>, vector<1x256xf32>
    %4 = vector.broadcast %3 : vector<1x256xf32> to vector<32x256xf32>
    %5 = arith.addf %2, %4 : vector<32x256xf32>
    %6 = vector.extract_strided_slice %5 {offsets = [0, 0], sizes = [32, 128], strides = [1, 1]} : vector<32x256xf32> to vector<32x128xf32>
    %7 = arith.negf %6 : vector<32x128xf32>
    %8 = math.exp %7 : vector<32x128xf32>
    %cst_5 = arith.constant 1.000000e+00 : f32
    %9 = vector.broadcast %cst_5 : f32 to vector<32x128xf32>
    %10 = arith.addf %9, %8 : vector<32x128xf32>
    %11 = arith.divf %9, %10 : vector<32x128xf32>
    %12 = vector.extract_strided_slice %5 {offsets = [0, 128], sizes = [32, 128], strides = [1, 1]} : vector<32x256xf32> to vector<32x128xf32>
    %cst_6 = arith.constant 0.000000e+00 : f32
    %13 = vector.broadcast %cst_6 : f32 to vector<32x128xf32>
    %14 = arith.maximumf %12, %13 : vector<32x128xf32>
    %15 = arith.subf %14, %0 : vector<32x128xf32>
    %16 = arith.mulf %11, %15 : vector<32x128xf32>
    %17 = arith.addf %0, %16 : vector<32x128xf32>
    %c0_7 = arith.constant 0 : index
    %c0_8 = arith.constant 0 : index
    %18 = vector.load %arg4[%c0_7, %c0_8] : memref<32x128xf32, #tpu.memory_space<vmem>>, vector<32x128xf32>
    tpu.vector_store %arg4[%c0_7, %c0_8], %17 {strides = array<i32>} : memref<32x128xf32, #tpu.memory_space<vmem>>, vector<32x128xf32>,
    return
  }
  func.func @transform_0(%arg0: i32) -> (i32, i32) {
    %c0_i32 = arith.constant 0 : i32
    %c0_i32_0 = arith.constant 0 : i32
    return %arg0, %c0_i32 : i32, i32
  }
  func.func @transform_1(%arg0: i32) -> (i32, i32) {
    %c0_i32 = arith.constant 0 : i32
    %c0_i32_0 = arith.constant 0 : i32
    %c0_i32_1 = arith.constant 0 : i32
    return %c0_i32, %c0_i32_0 : i32, i32
  }
  func.func @transform_2(%arg0: i32) -> (i32, i32) {
    %c0_i32 = arith.constant 0 : i32
    %c0_i32_0 = arith.constant 0 : i32
    %c0_i32_1 = arith.constant 0 : i32
    return %c0_i32, %c0_i32_0 : i32, i32
  }
  func.func @transform_3(%arg0: i32) -> (i32, i32) {
    %c0_i32 = arith.constant 0 : i32
    %c0_i32_0 = arith.constant 0 : i32
    return %arg0, %c0_i32 : i32, i32
  }
}

</mosaic_0001>

<llo_original>
// kernel: tpu_custom_call.1
$region0: #{tpu_custom_call.1}
  #allocation0 [shape = 'u32[]', space=smem, size = 0x4, offset = 0x4, fixed_abs, tag = 'smem constant byte address 0x4 - core index']
  #allocation1 [shape = 'u32[144,128]{1,0:T(1,128)}', space=vmem, size = 0x12000, scoped, tag = 'internal scratch']
  %s0 = inlined_call_operand.hbm [shape: f32[64,128], index: 0, kind: input, shape index: {}]
  %s1 = inlined_call_operand.hbm [shape: f32[128,256], index: 1, kind: input, shape index: {}]
  %s2 = inlined_call_operand.hbm [shape: f32[1,256], index: 2, kind: input, shape index: {}]
  %s3 = inlined_call_operand.hbm [shape: f32[64,128], index: 3, kind: output, shape index: {}]
  %s4 = sld [smem:[#allocation0]]
  $region57: #{tpu_custom_call.1} parent=0
    _
  %s6 = ssub.s32 1, %s4
  %s7 = scalar_select 0, %s6, %s4
  $region1: #{tpu_custom_call.1} parent=0
    #allocation2 [shape = 'u8[32768]{0}', space=vmem, size = 0x8000, scoped, tag = 'input window, operand 0']
    #allocation3 [shape = 's32[2]{0}', space=sflag, size = 0x8, scoped, tag = 'scoped memory for tpu_custom_call.1']
    #allocation4 [shape = 's32[2]{0}', space=sflag, size = 0x8, scoped, tag = 'scoped memory for tpu_custom_call.1']
    #allocation5 [shape = 'u8[131072]{0}', space=vmem, size = 0x20000, scoped, tag = 'input window, operand 1, single buffered']
    #allocation6 [shape = 's32[1]{0}', space=sflag, size = 0x4, scoped, tag = 'scoped memory for tpu_custom_call.1']
    #allocation7 [shape = 'u8[1024]{0}', space=vmem, size = 0x400, scoped, tag = 'input window, operand 2, single buffered']
    #allocation8 [shape = 'u8[32768]{0}', space=vmem, size = 0x8000, scoped, tag = 'output window, operand 0']
    %8 = vsyncpa [#allocation3], 0
    %s9 = scalar_lea.sflag [#allocation3], 1
    %10 = vsyncpa %s9, 0
    %11 = vsyncpa [#allocation6], 0
    %12 = vsyncpa [#allocation4], 0
    %s13 = scalar_lea.sflag [#allocation4], 1
    %14 = vsyncpa %s13, 0
    loop: start=0, step=1, limit=4
    $region2: #{tpu_custom_call.1} parent=1 // loop_pre_header
      _
    $region3: #{tpu_custom_call.1} parent=1 // loop_header
      %s16 = sphi 0, %s20
      %p17 = scmp.ge.s32.totalorder %s16, 4
      %s26 = sphi 0, %s28
      %s29 = sphi 0, %s26
      %s30 = sphi 0, %s29
      %s46 = sphi 0, %s30
      %s50 = sphi 0, %s50
      %s52 = sphi 0, %s50
      %s53 = sphi 0, %s52
      %s67 = sphi 0, %s53
      %s71 = sphi 0, %s71
      %s73 = sphi 0, %s71
      %s74 = sphi 0, %s73
      %s88 = sphi 0, %s74
      %s94 = sphi 0, %s96
      %s97 = sphi 0, %s94
      %s98 = sphi 0, %s97
      %s114 = sphi 0, %s98
    $region4: #{tpu_custom_call.1} parent=1 // loop_header_branch
      %19 = sbr.rel (%p17) target = $region8
    $region5: #{tpu_custom_call.1} parent=1 // loop_body
      %s21 = ssub.s32 %s16, 1
      %s22 = ssub.s32 %s16, 2
      %s23 = sadd.s32 %s16, 1
      %s24 = ssub.s32 %s16, %s23
      %p25 = scmp.eq.s32.totalorder %s24, 0
      %s27 = sadd.s32 %s26, 1
      %s28 = scalar_select %p25, %s26, %s27
      %p31 = pneg %p25
      %p32 = scmp.eq.s32.totalorder %s16, 1
      %p33 = por %p31, %p32
      %p34 = scmp.ne.s32.totalorder %s26, %s29
      %p35 = scmp.eq.s32.totalorder %s16, 0
      %p36 = por %p34, %p35
      %p37 = scmp.ne.s32.totalorder %s26, %s29
      %p38 = scmp.eq.s32.totalorder %s21, 1
      %p39 = por %p37, %p38
      %p40 = scmp.ne.s32.totalorder %s29, %s30
      %p41 = scmp.eq.s32.totalorder %s21, 0
      %p42 = por %p40, %p41
      %p43 = scmp.ne.s32.totalorder %s29, %s30
      %p44 = scmp.eq.s32.totalorder %s22, 1
      %p45 = por %p43, %p44
      %p47 = scmp.ne.s32.totalorder %s30, %s46
      %p48 = scmp.eq.s32.totalorder %s22, 0
      %p49 = por %p47, %p48
      %s51 = sadd.s32 %s50, 1
      %p54 = scmp.eq.s32.totalorder %s16, 1
      %p55 = scmp.ne.s32.totalorder %s50, %s52
      %p56 = scmp.eq.s32.totalorder %s16, 0
      %p57 = por %p55, %p56
      %p58 = scmp.ne.s32.totalorder %s50, %s52
      %p59 = scmp.eq.s32.totalorder %s21, 1
      %p60 = por %p58, %p59
      %p61 = scmp.ne.s32.totalorder %s52, %s53
      %p62 = scmp.eq.s32.totalorder %s21, 0
      %p63 = por %p61, %p62
      %p64 = scmp.ne.s32.totalorder %s52, %s53
      %p65 = scmp.eq.s32.totalorder %s22, 1
      %p66 = por %p64, %p65
      %p68 = scmp.ne.s32.totalorder %s53, %s67
      %p69 = scmp.eq.s32.totalorder %s22, 0
      %p70 = por %p68, %p69
      %s72 = sadd.s32 %s71, 1
      %p75 = scmp.eq.s32.totalorder %s16, 1
      %p76 = scmp.ne.s32.totalorder %s71, %s73
      %p77 = scmp.eq.s32.totalorder %s16, 0
      %p78 = por %p76, %p77
      %p79 = scmp.ne.s32.totalorder %s71, %s73
      %p80 = scmp.eq.s32.totalorder %s21, 1
      %p81 = por %p79, %p80
      %p82 = scmp.ne.s32.totalorder %s73, %s74
      %p83 = scmp.eq.s32.totalorder %s21, 0
      %p84 = por %p82, %p83
      %p85 = scmp.ne.s32.totalorder %s73, %s74
      %p86 = scmp.eq.s32.totalorder %s22, 1
      %p87 = por %p85, %p86
      %p89 = scmp.ne.s32.totalorder %s74, %s88
      %p90 = scmp.eq.s32.totalorder %s22, 0
      %p91 = por %p89, %p90
      %s92 = ssub.s32 %s16, %s23
      %p93 = scmp.eq.s32.totalorder %s92, 0
      %s95 = sadd.s32 %s94, 1
      %s96 = scalar_select %p93, %s94, %s95
      %p99 = pneg %p93
      %p100 = scmp.eq.s32.totalorder %s16, 1
      %p101 = por %p99, %p100
      %p102 = scmp.ne.s32.totalorder %s94, %s97
      %p103 = scmp.eq.s32.totalorder %s16, 0
      %p104 = por %p102, %p103
      %p105 = scmp.ne.s32.totalorder %s94, %s97
      %p106 = scmp.eq.s32.totalorder %s21, 1
      %p107 = por %p105, %p106
      %p108 = scmp.ne.s32.totalorder %s97, %s98
      %p109 = scmp.eq.s32.totalorder %s21, 0
      %p110 = por %p108, %p109
      %p111 = scmp.ne.s32.totalorder %s97, %s98
      %p112 = scmp.eq.s32.totalorder %s22, 1
      %p113 = por %p111, %p112
      %p115 = scmp.ne.s32.totalorder %s98, %s114
      %p116 = scmp.eq.s32.totalorder %s22, 0
      %p117 = por %p115, %p116
      %p118 = scmp.le.s32.totalorder 1, %s16
      %p119 = scmp.lt.s32.totalorder %s16, 3
      %p120 = pnand %p118, %p119
      %p121 = pneg %p120
      // Predicated region
      $region9: #{tpu_custom_call.1} parent=5 // pred_check
        _
      $region10: #{tpu_custom_call.1} parent=5 // pred_check_branch
        %123 = sbr.rel (%p120) target = $region12
      $region11: #{tpu_custom_call.1} parent=5 // pred_region
        %s124 = ssub.s32 %s16, 1
        // Predicated region
        $region13: #{tpu_custom_call.1} parent=11 // pred_check
          %p125 = pneg %p63
        $region14: #{tpu_custom_call.1} parent=11 // pred_check_branch
          %127 = sbr.rel (%p125) target = $region16
        $region15: #{tpu_custom_call.1} parent=11 // pred_region
          %s129 = ssub.s32 4096, 4096
          %130 = vsyncadd [#allocation6], %s129
          %s131 = sshll.u32 [#allocation5], 4
          %s132 = int_to_ptr.vmem [resolvable:$true] %s131
          %137 = dma.hbm_to_vmem [thread:$0]  %s1, 4096, %s132, [#allocation6], 256, 256, 16
        $region16: #{tpu_custom_call.1} parent=11 // pred_fallthru
          _
        // Predicated region
        $region17: #{tpu_custom_call.1} parent=11 // pred_check
          %p138 = pneg %p84
        $region18: #{tpu_custom_call.1} parent=11 // pred_check_branch
          %140 = sbr.rel (%p138) target = $region20
        $region19: #{tpu_custom_call.1} parent=11 // pred_region
          %s142 = ssub.s32 32, 32
          %143 = vsyncadd [#allocation6], %s142
          %s145 = sshll.u32 [#allocation7], 4
          %s146 = int_to_ptr.vmem [resolvable:$true] %s145
          %148 = dma.hbm_to_vmem [thread:$0]  %s2, 32, %s146, [#allocation6]
        $region20: #{tpu_custom_call.1} parent=11 // pred_fallthru
          _
      $region12: #{tpu_custom_call.1} parent=5 // pred_fallthru
        _
      %p149 = scmp.lt.s32.totalorder %s16, 2
      // Predicated region
      $region21: #{tpu_custom_call.1} parent=5 // pred_check
        %p150 = pneg %p149
      $region22: #{tpu_custom_call.1} parent=5 // pred_check_branch
        %152 = sbr.rel (%p150) target = $region24
      $region23: #{tpu_custom_call.1} parent=5 // pred_region
        // Predicated region
        $region25: #{tpu_custom_call.1} parent=23 // pred_check
          %p153 = pneg %p36
        $region26: #{tpu_custom_call.1} parent=23 // pred_check_branch
          %155 = sbr.rel (%p153) target = $region28
        $region27: #{tpu_custom_call.1} parent=23 // pred_region
          %s156 = sand.u32 %s26, 1
          %s157 = scalar_lea.sflag [#allocation3], %s156
          %s158 = sand.u32 %s26, 1
          %s159 = smul.addr %s158, 32
          %s160 = scalar_lea.vmem [#allocation2], %s159
          %s161 = smul.u32 4, %s16
          %s163 = ssub.s32 512, 512
          %164 = vsyncadd %s157, %s163
          %s165 = smul.addr %s161, 128
          %s166 = scalar_lea.hbm %s0, %s165
          %s167 = sshll.u32 %s160, 4
          %s168 = int_to_ptr.vmem [resolvable:$true] %s167
          %173 = dma.hbm_to_vmem [thread:$0]  %s166, 512, %s168, %s157, 128, 128, 8
        $region28: #{tpu_custom_call.1} parent=23 // pred_fallthru
          _
      $region24: #{tpu_custom_call.1} parent=5 // pred_fallthru
        _
      %p174 = scmp.le.s32.totalorder 1, %s16
      %p175 = scmp.lt.s32.totalorder %s16, 3
      %p176 = pnand %p174, %p175
      %p177 = pneg %p176
      // Predicated region
      $region29: #{tpu_custom_call.1} parent=5 // pred_check
        _
      $region30: #{tpu_custom_call.1} parent=5 // pred_check_branch
        %179 = sbr.rel (%p176) target = $region32
      $region31: #{tpu_custom_call.1} parent=5 // pred_region
        %s180 = ssub.s32 %s16, 1
        %s181 = sand.u32 %s29, 1
        %s182 = scalar_lea.sflag [#allocation3], %s181
        %s183 = sand.u32 %s29, 1
        %s184 = smul.addr %s183, 32
        %s185 = scalar_lea.vmem [#allocation2], %s184
        // Predicated region
        $region33: #{tpu_custom_call.1} parent=31 // pred_check
          %p186 = pneg %p42
        $region34: #{tpu_custom_call.1} parent=31 // pred_check_branch
          %188 = sbr.rel (%p186) target = $region36
        $region35: #{tpu_custom_call.1} parent=31 // pred_region
          %189 = dma.done %s182, 512
        $region36: #{tpu_custom_call.1} parent=31 // pred_fallthru
          _
        // Predicated region
        $region37: #{tpu_custom_call.1} parent=31 // pred_check
          %p190 = pneg %p63
        $region38: #{tpu_custom_call.1} parent=31 // pred_check_branch
          %192 = sbr.rel (%p190) target = $region40
        $region39: #{tpu_custom_call.1} parent=31 // pred_region
          %193 = dma.done [#allocation6], 4096
        $region40: #{tpu_custom_call.1} parent=31 // pred_fallthru
          _
        // Predicated region
        $region41: #{tpu_custom_call.1} parent=31 // pred_check
          %p194 = pneg %p84
        $region42: #{tpu_custom_call.1} parent=31 // pred_check_branch
          %196 = sbr.rel (%p194) target = $region44
        $region43: #{tpu_custom_call.1} parent=31 // pred_region
          %197 = dma.done [#allocation6], 32
        $region44: #{tpu_custom_call.1} parent=31 // pred_fallthru
          _
        %s198 = sand.u32 %s29, 1
        %s199 = scalar_lea.sflag [#allocation3], %s198
        %s200 = sand.u32 %s29, 1
        %s201 = smul.addr %s200, 32
        %s202 = scalar_lea.vmem [#allocation2], %s201
        %p203 = pneg %p42
        %p204 = pneg %p39
        %p205 = pneg %p63
        %p206 = pneg %p60
        %p207 = pneg %p84
        %p208 = pneg %p81
        %p209 = pneg %p110
        %p210 = pneg %p107
        %s211 = sand.u32 %s97, 1
        %s212 = scalar_lea.sflag [#allocation4], %s211
        %s213 = sand.u32 %s97, 1
        %s214 = smul.addr %s213, 32
        %s215 = scalar_lea.vmem [#allocation8], %s214
        %s216 = smul.u32 4, %s21
        %s217 = smul.u32 4, %s21
        %v218 = vld [vmem:[%s185] sm:$0xff]
        %v219 = vld [vmem:[%s185 + $0x8] sm:$0xff]
        %v220 = vld [vmem:[%s185 + $0x10] sm:$0xff]
        %v221 = vld [vmem:[%s185 + $0x18] sm:$0xff]
        %v222 = vld [vmem:[#allocation5] sm:$0xff]
        %v223 = vld [vmem:[#allocation5 + $0x8] sm:$0xff]
        %v224 = vld [vmem:[#allocation5 + $0x10] sm:$0xff]
        %v225 = vld [vmem:[#allocation5 + $0x18] sm:$0xff]
        %v226 = vld [vmem:[#allocation5 + $0x20] sm:$0xff]
        %v227 = vld [vmem:[#allocation5 + $0x28] sm:$0xff]
        %v228 = vld [vmem:[#allocation5 + $0x30] sm:$0xff]
        %v229 = vld [vmem:[#allocation5 + $0x38] sm:$0xff]
        %v230 = vld [vmem:[#allocation5 + $0x40] sm:$0xff]
        %v231 = vld [vmem:[#allocation5 + $0x48] sm:$0xff]
        %v232 = vld [vmem:[#allocation5 + $0x50] sm:$0xff]
        %v233 = vld [vmem:[#allocation5 + $0x58] sm:$0xff]
        %v234 = vld [vmem:[#allocation5 + $0x60] sm:$0xff]
        %v235 = vld [vmem:[#allocation5 + $0x68] sm:$0xff]
        %v236 = vld [vmem:[#allocation5 + $0x70] sm:$0xff]
        %v237 = vld [vmem:[#allocation5 + $0x78] sm:$0xff]
        %v238 = vld [vmem:[#allocation5 + $0x80] sm:$0xff]
        %v239 = vld [vmem:[#allocation5 + $0x88] sm:$0xff]
        %v240 = vld [vmem:[#allocation5 + $0x90] sm:$0xff]
        %v241 = vld [vmem:[#allocation5 + $0x98] sm:$0xff]
        %v242 = vld [vmem:[#allocation5 + $0xa0] sm:$0xff]
        %v243 = vld [vmem:[#allocation5 + $0xa8] sm:$0xff]
        %v244 = vld [vmem:[#allocation5 + $0xb0] sm:$0xff]
        %v245 = vld [vmem:[#allocation5 + $0xb8] sm:$0xff]
        %v246 = vld [vmem:[#allocation5 + $0xc0] sm:$0xff]
        %v247 = vld [vmem:[#allocation5 + $0xc8] sm:$0xff]
        %v248 = vld [vmem:[#allocation5 + $0xd0] sm:$0xff]
        %v249 = vld [vmem:[#allocation5 + $0xd8] sm:$0xff]
        %v250 = vld [vmem:[#allocation5 + $0xe0] sm:$0xff]
        %v251 = vld [vmem:[#allocation5 + $0xe8] sm:$0xff]
        %v252 = vld [vmem:[#allocation5 + $0xf0] sm:$0xff]
        %v253 = vld [vmem:[#allocation5 + $0xf8] sm:$0xff]
        %v254 = vld [vmem:[#allocation7] sm:$0x3]
        %v256 = vlaneseq
        %v257 = vshrl.u32 %v256, 7
        %v258 = vsub.s32 0, %v257
        %v259 = vrot.slane %v254, %v258
        %v260 = vlaneseq
        %v261 = vshrl.u32 %v260, 7
        %v262 = vsub.s32 1, %v261
        %v263 = vrot.slane %v254, %v262
        %266 = vmatprep.subr.mxu0 %v223
        %267 = vmatpush1.msra.mxu0 %v222
        %268 = vmatprep.subr.mxu0 %v225
        %269 = vmatpush1.msra.mxu0 %v224
        %270 = vmatprep.subr.mxu0 %v227
        %271 = vmatpush1.msra.mxu0 %v226
        %272 = vmatprep.subr.mxu0 %v229
        %273 = vmatpush1.msra.mxu0 %v228
        %274 = vmatprep.subr.mxu0 %v231
        %275 = vmatpush1.msra.mxu0 %v230
        %276 = vmatprep.subr.mxu0 %v233
        %277 = vmatpush1.msra.mxu0 %v232
        %278 = vmatprep.subr.mxu0 %v235
        %279 = vmatpush1.msra.mxu0 %v234
        %280 = vmatprep.subr.mxu0 %v237
        %281 = vmatpush1.msra.mxu0 %v236
        %282 = vmatprep.subr.mxu0 %v239
        %283 = vmatpush1.msra.mxu0 %v238
        %284 = vmatprep.subr.mxu0 %v241
        %285 = vmatpush1.msra.mxu0 %v240
        %286 = vmatprep.subr.mxu0 %v243
        %287 = vmatpush1.msra.mxu0 %v242
        %288 = vmatprep.subr.mxu0 %v245
        %289 = vmatpush1.msra.mxu0 %v244
        %290 = vmatprep.subr.mxu0 %v247
        %291 = vmatpush1.msra.mxu0 %v246
        %292 = vmatprep.subr.mxu0 %v249
        %293 = vmatpush1.msra.mxu0 %v248
        %294 = vmatprep.subr.mxu0 %v251
        %295 = vmatpush1.msra.mxu0 %v250
        %296 = vmatprep.subr.mxu0 %v253
        %297 = vmatpush1.msra.mxu0 %v252
        %298 = vmatprep.subr.mxu0 0.0
        %299 = vmatpush1.msra.mxu0 0.0
        %300 = vmatprep.subr.mxu0 0.0
        %301 = vmatpush1.msra.mxu0 0.0
        %302 = vmatprep.subr.mxu0 0.0
        %303 = vmatpush1.msra.mxu0 0.0
        %304 = vmatprep.subr.mxu0 0.0
        %305 = vmatpush1.msra.mxu0 0.0
        %306 = vmatprep.subr.mxu0 0.0
        %307 = vmatpush1.msra.mxu0 0.0
        %308 = vmatprep.subr.mxu0 0.0
        %309 = vmatpush1.msra.mxu0 0.0
        %310 = vmatprep.subr.mxu0 0.0
        %311 = vmatpush1.msra.mxu0 0.0
        %312 = vmatprep.subr.mxu0 0.0
        %313 = vmatpush1.msra.mxu0 0.0
        %314 = vmatprep.subr.mxu0 0.0
        %315 = vmatpush1.msra.mxu0 0.0
        %316 = vmatprep.subr.mxu0 0.0
        %317 = vmatpush1.msra.mxu0 0.0
        %318 = vmatprep.subr.mxu0 0.0
        %319 = vmatpush1.msra.mxu0 0.0
        %320 = vmatprep.subr.mxu0 0.0
        %321 = vmatpush1.msra.mxu0 0.0
        %322 = vmatprep.subr.mxu0 0.0
        %323 = vmatpush1.msra.mxu0 0.0
        %324 = vmatprep.subr.mxu0 0.0
        %325 = vmatpush1.msra.mxu0 0.0
        %326 = vmatprep.subr.mxu0 0.0
        %327 = vmatpush1.msra.mxu0 0.0
        %328 = vmatprep.subr.mxu0 0.0
        %329 = vmatpush1.msra.mxu0 0.0
        %330 = vmatprep.mubr.f32.mxu0 0.0
        %331 = vmatmul.mubr.f32.gmra.mrb[0].mxu0 %v218
        %v332 = vpop.f32.mrb[0].mxu0
        %v333 = vadd.f32 %v259, %v332
        %v334 = vpop.f32.mrb[0].mxu0
        %v335 = vadd.f32 %v263, %v334
        %336 = vmatprep.mubr.f32.mxu0 0.0
        %337 = vmatmul.mubr.f32.gmra.mrb[0].mxu0 %v219
        %v338 = vpop.f32.mrb[0].mxu0
        %v339 = vadd.f32 %v259, %v338
        %v340 = vpop.f32.mrb[0].mxu0
        %v341 = vadd.f32 %v263, %v340
        %342 = vmatprep.mubr.f32.mxu0 0.0
        %343 = vmatmul.mubr.f32.gmra.mrb[0].mxu0 %v220
        %v344 = vpop.f32.mrb[0].mxu0
        %v345 = vadd.f32 %v259, %v344
        %v346 = vpop.f32.mrb[0].mxu0
        %v347 = vadd.f32 %v263, %v346
        %348 = vmatprep.mubr.f32.mxu0 0.0
        %349 = vmatmul.mubr.f32.gmra.mrb[0].mxu0 %v221
        %v350 = vpop.f32.mrb[0].mxu0
        %v351 = vadd.f32 %v259, %v350
        %v352 = vpop.f32.mrb[0].mxu0
        %v353 = vadd.f32 %v263, %v352
        %354 = vdwg.mxu0
        %v355 = vxor.u32 %v333, 2147483648
        %v356 = vxor.u32 %v339, 2147483648
        %v357 = vxor.u32 %v345, 2147483648
        %v358 = vxor.u32 %v351, 2147483648
        %v359 = vmul.f32 %v355, 1.442695
        %v360 = vpow.pop %v359
        %v361 = vmul.f32 %v356, 1.442695
        %v362 = vpow.pop %v361
        %v363 = vmul.f32 %v357, 1.442695
        %v364 = vpow.pop %v363
        %v365 = vmul.f32 %v358, 1.442695
        %v366 = vpow.pop %v365
        %v367 = vadd.f32 %v360, 1.0
        %v368 = vadd.f32 %v362, 1.0
        %v369 = vadd.f32 %v364, 1.0
        %v370 = vadd.f32 %v366, 1.0
        %v371 = vrcp.pop %v367
        %v372 = vmul.f32 1.0, %v371
        %v373 = vrcp.pop %v368
        %v374 = vmul.f32 1.0, %v373
        %v375 = vrcp.pop %v369
        %v376 = vmul.f32 1.0, %v375
        %v377 = vrcp.pop %v370
        %v378 = vmul.f32 1.0, %v377
        %v379 = vmax.f32 %v335, 0.0
        %v380 = vmax.f32 %v341, 0.0
        %v381 = vmax.f32 %v347, 0.0
        %v382 = vmax.f32 %v353, 0.0
        %v383 = vsub.f32 %v379, %v218
        %v384 = vsub.f32 %v380, %v219
        %v385 = vsub.f32 %v381, %v220
        %v386 = vsub.f32 %v382, %v221
        %v387 = vmul.f32 %v372, %v383
        %v388 = vmul.f32 %v374, %v384
        %v389 = vmul.f32 %v376, %v385
        %v390 = vmul.f32 %v378, %v386
        %v391 = vadd.f32 %v218, %v387
        %v392 = vadd.f32 %v219, %v388
        %v393 = vadd.f32 %v220, %v389
        %v394 = vadd.f32 %v221, %v390
        %395 = vst [vmem:[%s215] sm:$0xff] %v391
        %396 = vst [vmem:[%s215 + $0x8] sm:$0xff] %v392
        %397 = vst [vmem:[%s215 + $0x10] sm:$0xff] %v393
        %398 = vst [vmem:[%s215 + $0x18] sm:$0xff] %v394
        %s399 = sand.u32 %s97, 1
        %s400 = scalar_lea.sflag [#allocation4], %s399
        %s401 = sand.u32 %s97, 1
        %s402 = smul.addr %s401, 32
        %s403 = scalar_lea.vmem [#allocation8], %s402
        // Predicated region
        $region45: #{tpu_custom_call.1} parent=31 // pred_check
          %p404 = pneg %p107
        $region46: #{tpu_custom_call.1} parent=31 // pred_check_branch
          %406 = sbr.rel (%p404) target = $region48
        $region47: #{tpu_custom_call.1} parent=31 // pred_region
          %s407 = smul.u32 4, %s21
          %s409 = ssub.s32 512, 512
          %410 = vsyncadd %s400, %s409
          %s411 = smul.addr %s407, 128
          %s412 = scalar_lea.hbm %s3, %s411
          %s413 = sshll.u32 %s403, 4
          %s414 = int_to_ptr.vmem [resolvable:$true] %s413
          %419 = dma.vmem_to_hbm [thread:$0]  %s414, 512, %s412, %s400, 128, 128, 8
        $region48: #{tpu_custom_call.1} parent=31 // pred_fallthru
          _
      $region32: #{tpu_custom_call.1} parent=5 // pred_fallthru
        _
      %p420 = scmp.le.s32.totalorder 2, %s16
      // Predicated region
      $region49: #{tpu_custom_call.1} parent=5 // pred_check
        %p421 = pneg %p420
      $region50: #{tpu_custom_call.1} parent=5 // pred_check_branch
        %423 = sbr.rel (%p421) target = $region52
      $region51: #{tpu_custom_call.1} parent=5 // pred_region
        %s424 = ssub.s32 %s16, 2
        // Predicated region
        $region53: #{tpu_custom_call.1} parent=51 // pred_check
          %p425 = pneg %p113
        $region54: #{tpu_custom_call.1} parent=51 // pred_check_branch
          %427 = sbr.rel (%p425) target = $region56
        $region55: #{tpu_custom_call.1} parent=51 // pred_region
          %s428 = sand.u32 %s98, 1
          %s429 = scalar_lea.sflag [#allocation4], %s428
          %s430 = sand.u32 %s98, 1
          %s431 = smul.addr %s430, 32
          %s432 = scalar_lea.vmem [#allocation8], %s431
          %433 = dma.done %s429, 512
        $region56: #{tpu_custom_call.1} parent=51 // pred_fallthru
          _
      $region52: #{tpu_custom_call.1} parent=5 // pred_fallthru
        _
    $region6: #{tpu_custom_call.1} parent=1 // loop_footer
      %s20 = sadd.s32 1, %s16
    $region7: #{tpu_custom_call.1} parent=1 // loop_footer_branch
      %15 = sbr.rel target = $region3
    $region8: #{tpu_custom_call.1} parent=1 // loop_exit
      _
    %434 = vsyncpa [#allocation3], 1
    %s435 = scalar_lea.sflag [#allocation3], 1
    %436 = vsyncpa %s435, 1
    %437 = vsyncpa [#allocation6], 1
    %438 = vsyncpa [#allocation4], 1
    %s439 = scalar_lea.sflag [#allocation4], 1
    %440 = vsyncpa %s439, 1

</llo_original>
